<compile_context>
chip_gen: v7x
topology: tpu7x:2x2x1
jax: 0.10.0
libtpu: 0.0.40
codegen_flags: <defaults>
</compile_context>

<pallas_src>
import numpy as np
import jax
import jax.numpy as jnp
from jax.experimental import pallas as pl
from jax.experimental.pallas import tpu as pltpu


def make_scpa_kernel(shifts, nf):
    """shifts: static tuple of 9 lane-roll amounts (tap order k = ky*3 + kx)."""

    def kernel(x_ref, m_ref, w1_ref, w2_ref, b2_ref, w5_ref, w3_ref, o_ref):
        x = x_ref[...].astype(jnp.float32)              # (nf, Tb), lane-dense
        mall = m_ref[...]                               # (8, Tb) boundary masks
        mrows = [mall[j:j + 1, :] for j in range(8)]    # hoisted once

        def lrelu(v):
            return jnp.where(v >= 0.0, v, 0.2 * v)

        def mm(w_ref, act):                             # bf16 MXU, f32 accumulate
            return jnp.dot(w_ref[...], act.astype(jnp.bfloat16),
                           preferred_element_type=jnp.float32)

        def window(t):                                  # (nf,Tb) -> (9*nf,Tb)
            cols, j = [], 0
            for k in range(9):
                if k == 4:                              # center tap: no roll/mask
                    cols.append(t)
                else:
                    cols.append(pltpu.roll(t, shifts[k], axis=1) * mrows[j])
                    j += 1
            # nf is a multiple of 8 -> pieces are sublane-aligned.
            return jnp.concatenate(cols, axis=0)

        # conv1_a + conv1_b fused: ab = [out_a ; out_b]  (one matmul, one lrelu)
        ab = lrelu(mm(w1_ref, x))
        # k1 (branch a), k3 and k2 (branch b) fused into one window matmul.
        uz = mm(w2_ref, window(ab))                     # (2*nf, Tb)
        u = uz[0:nf, :]                                 # [k1(a) ; k3(b)]
        gate = jax.nn.sigmoid(uz[nf:2 * nf, :] + b2_ref[...])  # [1 ; sigmoid(k2(b)+bias)]
        v = u * gate                                    # [k1(a) ; k3(b)*y]  == [a2 ; pa]
        # k4 (on the PAConv product) + identity pass-through of a2, fused.
        w = lrelu(mm(w5_ref, window(v)))                # [out_a ; out_b] after LeakyReLU
        # conv3 on the (already stacked) concat + residual (f32).
        o_ref[...] = (mm(w3_ref, w) + x).astype(o_ref.dtype)

    return kernel


def scpa_forward(x, packed, images_per_block=None):
    """x: (N, nf, H, W) float32 (NCHW, as in PyTorch). packed: pack_params()."""
    N, nf, H, W = x.shape
    HW = H * W
    HWp = ((HW + 127) // 128) * 128            # per-image lane padding
    W1, W2, B2, W5, W3 = packed

    # ---- per-chip VMEM budget and block sizing ------------------------------
    try:
        cap = int(getattr(pltpu.get_tpu_info(), "vmem_capacity_bytes", 64 << 20))
    except Exception:                           # no TPU info available
        cap = 64 << 20
    vmem_limit = int(min(max(cap * 3 // 4, 32 << 20), 96 << 20))
    budget = int(min(max(cap // 3, 8 << 20), 48 << 20))
    # Rough live f32 words per lane column: double-buffered x/out I/O (4*nf),
    # masks (8), one (9*nf) window in f32 + its bf16 copy (~13.5*nf), misc
    # intermediates ab/uz/v/w (~5*nf).
    per_col_bytes = 4 * (4 * nf + 8 + (27 * nf) // 2 + 5 * nf)
    nb_max = max(1, (budget // per_col_bytes) // HWp)
    if images_per_block is not None:
        nb_max = max(1, min(nb_max, int(images_per_block)))
    divisors = [d for d in range(1, N + 1) if N % d == 0 and d <= nb_max]
    multi = [d for d in divisors if N // d >= 2]        # keep >=2 steps (v7x: 2 TCs)
    nb = max(multi) if multi else max(divisors)
    Tb = nb * HWp
    # TODO(synk): very large H*W (single image exceeding the VMEM budget) would
    # need halo-aware spatial tiling; this kernel tiles whole images only.

    # ---- boundary masks (8, Tb) and static lane-roll amounts ----------------
    pix = np.arange(Tb)
    img_pix = pix % HWp
    hh, ww = img_pix // W, img_pix % W
    valid = img_pix < HW                                 # real (non-padded) pixel
    masks = np.zeros((8, Tb), np.float32)
    shifts, j = [], 0
    for dy in (-1, 0, 1):
        for dx in (-1, 0, 1):
            shifts.append(int((-(dy * W + dx)) % Tb))
            if dy == 0 and dx == 0:
                continue
            ok = valid & (hh + dy >= 0) & (hh + dy < H) & (ww + dx >= 0) & (ww + dx < W)
            masks[j] = ok
            j += 1
    masks = jnp.asarray(masks)

    # ---- lane-dense relayout: (N, nf, H, W) -> (nf, N*HWp) -------------------
    # TODO(synk): when SCPA blocks are chained inside PAN, keep activations in
    # this (nf, N*HWp) layout across blocks instead of transposing per call.
    x2 = jnp.transpose(x, (1, 0, 2, 3)).reshape(nf, N, HW)
    if HWp != HW:
        x2 = jnp.pad(x2, ((0, 0), (0, 0), (0, HWp - HW)))
    x2 = x2.reshape(nf, N * HWp)

    def wspec(a):
        nd = a.ndim
        return pl.BlockSpec(a.shape, lambda i, _nd=nd: (0,) * _nd)

    out2 = pl.pallas_call(
        make_scpa_kernel(tuple(shifts), nf),
        out_shape=jax.ShapeDtypeStruct((nf, N * HWp), x.dtype),
        grid=(N // nb,),
        in_specs=[
            pl.BlockSpec((nf, Tb), lambda i: (0, i)),
            wspec(masks), wspec(W1), wspec(W2), wspec(B2), wspec(W5), wspec(W3),
        ],
        out_specs=pl.BlockSpec((nf, Tb), lambda i: (0, i)),
        compiler_params=pltpu.CompilerParams(
            dimension_semantics=("parallel",),
            vmem_limit_bytes=vmem_limit),
    )(x2, masks, W1, W2, B2, W5, W3)

    out = out2.reshape(nf, N, HWp)[:, :, :HW].reshape(nf, N, H, W)
    return jnp.transpose(out, (1, 0, 2, 3))


def init_params(key, nf):
    """PyTorch-layout parameters: 1x1 convs as (O, I); 3x3 convs as OIHW."""
    gw = nf // 2
    ks = jax.random.split(key, 8)
    s = 0.2
    nrm = jax.random.normal
    return dict(
        w1a=s * nrm(ks[0], (gw, nf), jnp.float32),        # conv1_a 1x1
        w1b=s * nrm(ks[1], (gw, nf), jnp.float32),        # conv1_b 1x1
        wk1=s * nrm(ks[2], (gw, gw, 3, 3), jnp.float32),  # k1 3x3
        wk2=s * nrm(ks[3], (gw, gw), jnp.float32),        # PAConv.k2 1x1
        bk2=s * nrm(ks[4], (gw,), jnp.float32),           # PAConv.k2 bias
        wk3=s * nrm(ks[5], (gw, gw, 3, 3), jnp.float32),  # PAConv.k3 3x3
        wk4=s * nrm(ks[6], (gw, gw, 3, 3), jnp.float32),  # PAConv.k4 3x3
        w3=s * nrm(ks[7], (nf, 2 * gw), jnp.float32),     # conv3 1x1
    )


def pack_params(p):
    """Host-side weight prep into the kernel's fused, matmul-friendly layout."""
    gw, nf = p["w1a"].shape
    w1a = np.asarray(p["w1a"], np.float32)
    w1b = np.asarray(p["w1b"], np.float32)
    wk1 = np.asarray(p["wk1"], np.float32)
    wk2 = np.asarray(p["wk2"], np.float32)
    bk2 = np.asarray(p["bk2"], np.float32)
    wk3 = np.asarray(p["wk3"], np.float32)
    wk4 = np.asarray(p["wk4"], np.float32)
    w3 = np.asarray(p["w3"], np.float32)

    # Stage 1: conv1_a and conv1_b stacked -> (nf, nf).
    W1 = np.concatenate([w1a, w1b], axis=0)

    # Stage 2: one window matmul producing [k1(a); k3(b); gate-dummy; k2(b)].
    # Window columns are tap-major: tap k (= ky*3+kx) holds rows [a(gw); b(gw)].
    W2 = np.zeros((2 * nf, 9 * nf), np.float32)
    # Stage 3: one window matmul producing [a2 pass-through; k4(pa)].
    W5 = np.zeros((nf, 9 * nf), np.float32)
    for k in range(9):
        ky, kx = k // 3, k % 3
        W2[0:gw, k * nf:k * nf + gw] = wk1[:, :, ky, kx]          # branch a
        W2[gw:nf, k * nf + gw:(k + 1) * nf] = wk3[:, :, ky, kx]   # branch b
        W5[gw:nf, k * nf + gw:(k + 1) * nf] = wk4[:, :, ky, kx]   # k4 on pa
    W2[nf + gw:2 * nf, 4 * nf + gw:5 * nf] = wk2                  # k2: center tap only
    W5[0:gw, 4 * nf:4 * nf + gw] = np.eye(gw, dtype=np.float32)   # pass a2 through

    B2 = np.zeros((nf, 1), np.float32)
    B2[0:gw, 0] = 60.0          # sigmoid(60) == 1.0 in f32 -> identity gate for a2
    B2[gw:nf, 0] = bk2

    bf = lambda a: jnp.asarray(a, jnp.bfloat16)
    return (bf(W1), bf(W2), jnp.asarray(B2), bf(W5), bf(w3))


def ref_scpa(x, p):
    """Pure-JAX NCHW reference mirroring the PyTorch forward (f32)."""
    dn = ("NCHW", "OIHW", "NCHW")

    def c1(v, w):
        return jax.lax.conv_general_dilated(
            v, w[:, :, None, None], (1, 1), "VALID", dimension_numbers=dn)

    def c3(v, w):
        return jax.lax.conv_general_dilated(
            v, w, (1, 1), ((1, 1), (1, 1)), dimension_numbers=dn)

    lr = lambda v: jnp.where(v >= 0.0, v, 0.2 * v)
    a = lr(c1(x, p["w1a"]))
    b = lr(c1(x, p["w1b"]))
    a = lr(c3(a, p["wk1"]))
    y = jax.nn.sigmoid(c1(b, p["wk2"]) + p["bk2"].reshape(1, -1, 1, 1))
    b = lr(c3(c3(b, p["wk3"]) * y, p["wk4"]))
    return c1(jnp.concatenate([a, b], axis=1), p["w3"]) + x


if __name__ == "__main__":
    key = jax.random.PRNGKey(0)
    kx, kp = jax.random.split(key)

    N, nf, H, W = 2, 8, 16, 16          # nf=8, reduction=2 -> group_width=4
    x = jax.random.normal(kx, (N, nf, H, W), jnp.float32)
    params = init_params(kp, nf)

    out = jax.block_until_ready(scpa_forward(x, pack_params(params)))
    ref = jax.block_until_ready(ref_scpa(x, params))

    assert out.shape == (N, nf, H, W)
    err = float(jnp.max(jnp.abs(out - ref)))
    # MXU operands are bf16 (f32 accumulation / elementwise), so allow a few e-2
    # of absolute error against the pure-f32 reference.
    assert err < 5e-2, f"max abs err {err}"
    print("KERNEL_OK")
</pallas_src>

<mosaic_0001>
module attributes {stable_mosaic.version = 11 : i64} {
  func.func @kernel(%arg0: i32, %arg1: memref<8x256xf32, #tpu.memory_space<vmem>>, %arg2: memref<8x256xf32, #tpu.memory_space<vmem>>, %arg3: memref<8x8xbf16, #tpu.memory_space<vmem>>, %arg4: memref<16x72xbf16, #tpu.memory_space<vmem>>, %arg5: memref<8x1xf32, #tpu.memory_space<vmem>>, %arg6: memref<8x72xbf16, #tpu.memory_space<vmem>>, %arg7: memref<8x8xbf16, #tpu.memory_space<vmem>>, %arg8: memref<8x256xf32, #tpu.memory_space<vmem>>) attributes {dimension_semantics = [#tpu.dimension_semantics<parallel>], iteration_bounds = array<i64: 2>, scalar_prefetch = 0 : i64, scratch_operands = 0 : i64, tpu.core_type = #tpu.core_type<tc>, window_params = [{transform_indices = @transform_0, window_bounds = array<i64: 8, 256>}, {pipeline_mode = #tpu.pipeline_mode<synchronous>, transform_indices = @transform_1, window_bounds = array<i64: 8, 256>}, {pipeline_mode = #tpu.pipeline_mode<synchronous>, transform_indices = @transform_2, window_bounds = array<i64: 8, 8>}, {pipeline_mode = #tpu.pipeline_mode<synchronous>, transform_indices = @transform_3, window_bounds = array<i64: 16, 72>}, {pipeline_mode = #tpu.pipeline_mode<synchronous>, transform_indices = @transform_4, window_bounds = array<i64: 8, 1>}, {pipeline_mode = #tpu.pipeline_mode<synchronous>, transform_indices = @transform_5, window_bounds = array<i64: 8, 72>}, {pipeline_mode = #tpu.pipeline_mode<synchronous>, transform_indices = @transform_6, window_bounds = array<i64: 8, 8>}, {transform_indices = @transform_7, window_bounds = array<i64: 8, 256>}]} {
    %c0 = arith.constant 0 : index
    %c0_0 = arith.constant 0 : index
    %0 = vector.load %arg1[%c0, %c0_0] : memref<8x256xf32, #tpu.memory_space<vmem>>, vector<8x256xf32>
    %c0_1 = arith.constant 0 : index
    %c0_2 = arith.constant 0 : index
    %1 = vector.load %arg2[%c0_1, %c0_2] : memref<8x256xf32, #tpu.memory_space<vmem>>, vector<8x256xf32>
    %2 = vector.extract_strided_slice %1 {offsets = [0, 0], sizes = [1, 256], strides = [1, 1]} : vector<8x256xf32> to vector<1x256xf32>
    %3 = vector.extract_strided_slice %1 {offsets = [1, 0], sizes = [1, 256], strides = [1, 1]} : vector<8x256xf32> to vector<1x256xf32>
    %4 = vector.extract_strided_slice %1 {offsets = [2, 0], sizes = [1, 256], strides = [1, 1]} : vector<8x256xf32> to vector<1x256xf32>
    %5 = vector.extract_strided_slice %1 {offsets = [3, 0], sizes = [1, 256], strides = [1, 1]} : vector<8x256xf32> to vector<1x256xf32>
    %6 = vector.extract_strided_slice %1 {offsets = [4, 0], sizes = [1, 256], strides = [1, 1]} : vector<8x256xf32> to vector<1x256xf32>
    %7 = vector.extract_strided_slice %1 {offsets = [5, 0], sizes = [1, 256], strides = [1, 1]} : vector<8x256xf32> to vector<1x256xf32>
    %8 = vector.extract_strided_slice %1 {offsets = [6, 0], sizes = [1, 256], strides = [1, 1]} : vector<8x256xf32> to vector<1x256xf32>
    %9 = vector.extract_strided_slice %1 {offsets = [7, 0], sizes = [1, 256], strides = [1, 1]} : vector<8x256xf32> to vector<1x256xf32>
    %c0_3 = arith.constant 0 : index
    %c0_4 = arith.constant 0 : index
    %10 = vector.load %arg3[%c0_3, %c0_4] : memref<8x8xbf16, #tpu.memory_space<vmem>>, vector<8x8xbf16>
    %11 = arith.truncf %0 : vector<8x256xf32> to vector<8x256xbf16>
    %cst = arith.constant dense<0.000000e+00> : vector<8x256xf32>
    %12 = tpu.matmul %10, %11, %cst {dimension_numbers = #tpu.dot_dimension_numbers<[1], [0], [0], [1], [0, 0, 1, 1], [], []>} : vector<8x8xbf16>, vector<8x256xbf16>, vector<8x256xf32> -> vector<8x256xf32>
    %cst_5 = arith.constant 0.000000e+00 : f32
    %13 = vector.broadcast %cst_5 : f32 to vector<8x256xf32>
    %14 = arith.cmpf oge, %12, %13 : vector<8x256xf32>
    %cst_6 = arith.constant 2.000000e-01 : f32
    %15 = vector.broadcast %cst_6 : f32 to vector<8x256xf32>
    %16 = arith.mulf %15, %12 : vector<8x256xf32>
    %17 = arith.select %14, %12, %16 : vector<8x256xi1>, vector<8x256xf32>
    %c17_i32 = arith.constant 17 : i32
    %18 = tpu.dynamic_rotate %17 by %c17_i32 dim 1 : vector<8x256xf32>, i32 -> vector<8x256xf32>
    %19 = vector.broadcast %2 : vector<1x256xf32> to vector<8x256xf32>
    %20 = arith.mulf %18, %19 : vector<8x256xf32>
    %c16_i32 = arith.constant 16 : i32
    %21 = tpu.dynamic_rotate %17 by %c16_i32 dim 1 : vector<8x256xf32>, i32 -> vector<8x256xf32>
    %22 = vector.broadcast %3 : vector<1x256xf32> to vector<8x256xf32>
    %23 = arith.mulf %21, %22 : vector<8x256xf32>
    %c15_i32 = arith.constant 15 : i32
    %24 = tpu.dynamic_rotate %17 by %c15_i32 dim 1 : vector<8x256xf32>, i32 -> vector<8x256xf32>
    %25 = vector.broadcast %4 : vector<1x256xf32> to vector<8x256xf32>
    %26 = arith.mulf %24, %25 : vector<8x256xf32>
    %c1_i32 = arith.constant 1 : i32
    %27 = tpu.dynamic_rotate %17 by %c1_i32 dim 1 : vector<8x256xf32>, i32 -> vector<8x256xf32>
    %28 = vector.broadcast %5 : vector<1x256xf32> to vector<8x256xf32>
    %29 = arith.mulf %27, %28 : vector<8x256xf32>
    %c255_i32 = arith.constant 255 : i32
    %30 = tpu.dynamic_rotate %17 by %c255_i32 dim 1 : vector<8x256xf32>, i32 -> vector<8x256xf32>
    %31 = vector.broadcast %6 : vector<1x256xf32> to vector<8x256xf32>
    %32 = arith.mulf %30, %31 : vector<8x256xf32>
    %c241_i32 = arith.constant 241 : i32
    %33 = tpu.dynamic_rotate %17 by %c241_i32 dim 1 : vector<8x256xf32>, i32 -> vector<8x256xf32>
    %34 = vector.broadcast %7 : vector<1x256xf32> to vector<8x256xf32>
    %35 = arith.mulf %33, %34 : vector<8x256xf32>
    %c240_i32 = arith.constant 240 : i32
    %36 = tpu.dynamic_rotate %17 by %c240_i32 dim 1 : vector<8x256xf32>, i32 -> vector<8x256xf32>
    %37 = vector.broadcast %8 : vector<1x256xf32> to vector<8x256xf32>
    %38 = arith.mulf %36, %37 : vector<8x256xf32>
    %c239_i32 = arith.constant 239 : i32
    %39 = tpu.dynamic_rotate %17 by %c239_i32 dim 1 : vector<8x256xf32>, i32 -> vector<8x256xf32>
    %40 = vector.broadcast %9 : vector<1x256xf32> to vector<8x256xf32>
    %41 = arith.mulf %39, %40 : vector<8x256xf32>
    %42 = tpu.concatenate %20, %23, %26, %29, %17, %32, %35, %38, %41 in 0 : vector<8x256xf32>, vector<8x256xf32>, vector<8x256xf32>, vector<8x256xf32>, vector<8x256xf32>, vector<8x256xf32>, vector<8x256xf32>, vector<8x256xf32>, vector<8x256xf32> -> vector<72x256xf32>
    %c0_7 = arith.constant 0 : index
    %c0_8 = arith.constant 0 : index
    %43 = vector.load %arg4[%c0_7, %c0_8] : memref<16x72xbf16, #tpu.memory_space<vmem>>, vector<16x72xbf16>
    %44 = arith.truncf %42 : vector<72x256xf32> to vector<72x256xbf16>
    %cst_9 = arith.constant dense<0.000000e+00> : vector<16x256xf32>
    %45 = tpu.matmul %43, %44, %cst_9 {dimension_numbers = #tpu.dot_dimension_numbers<[1], [0], [0], [1], [0, 0, 1, 1], [], []>} : vector<16x72xbf16>, vector<72x256xbf16>, vector<16x256xf32> -> vector<16x256xf32>
    %46 = vector.extract_strided_slice %45 {offsets = [0, 0], sizes = [8, 256], strides = [1, 1]} : vector<16x256xf32> to vector<8x256xf32>
    %47 = vector.extract_strided_slice %45 {offsets = [8, 0], sizes = [8, 256], strides = [1, 1]} : vector<16x256xf32> to vector<8x256xf32>
    %c0_10 = arith.constant 0 : index
    %c0_11 = arith.constant 0 : index
    %48 = vector.load %arg5[%c0_10, %c0_11] : memref<8x1xf32, #tpu.memory_space<vmem>>, vector<8x1xf32>
    %49 = vector.broadcast %48 : vector<8x1xf32> to vector<8x256xf32>
    %50 = arith.addf %47, %49 : vector<8x256xf32>
    %51 = arith.negf %50 : vector<8x256xf32>
    %52 = math.exp %51 : vector<8x256xf32>
    %cst_12 = arith.constant 1.000000e+00 : f32
    %53 = vector.broadcast %cst_12 : f32 to vector<8x256xf32>
    %54 = arith.addf %53, %52 : vector<8x256xf32>
    %55 = arith.divf %53, %54 : vector<8x256xf32>
    %56 = arith.mulf %46, %55 : vector<8x256xf32>
    %c17_i32_13 = arith.constant 17 : i32
    %57 = tpu.dynamic_rotate %56 by %c17_i32_13 dim 1 : vector<8x256xf32>, i32 -> vector<8x256xf32>
    %58 = vector.broadcast %2 : vector<1x256xf32> to vector<8x256xf32>
    %59 = arith.mulf %57, %58 : vector<8x256xf32>
    %c16_i32_14 = arith.constant 16 : i32
    %60 = tpu.dynamic_rotate %56 by %c16_i32_14 dim 1 : vector<8x256xf32>, i32 -> vector<8x256xf32>
    %61 = vector.broadcast %3 : vector<1x256xf32> to vector<8x256xf32>
    %62 = arith.mulf %60, %61 : vector<8x256xf32>
    %c15_i32_15 = arith.constant 15 : i32
    %63 = tpu.dynamic_rotate %56 by %c15_i32_15 dim 1 : vector<8x256xf32>, i32 -> vector<8x256xf32>
    %64 = vector.broadcast %4 : vector<1x256xf32> to vector<8x256xf32>
    %65 = arith.mulf %63, %64 : vector<8x256xf32>
    %c1_i32_16 = arith.constant 1 : i32
    %66 = tpu.dynamic_rotate %56 by %c1_i32_16 dim 1 : vector<8x256xf32>, i32 -> vector<8x256xf32>
    %67 = vector.broadcast %5 : vector<1x256xf32> to vector<8x256xf32>
    %68 = arith.mulf %66, %67 : vector<8x256xf32>
    %c255_i32_17 = arith.constant 255 : i32
    %69 = tpu.dynamic_rotate %56 by %c255_i32_17 dim 1 : vector<8x256xf32>, i32 -> vector<8x256xf32>
    %70 = vector.broadcast %6 : vector<1x256xf32> to vector<8x256xf32>
    %71 = arith.mulf %69, %70 : vector<8x256xf32>
    %c241_i32_18 = arith.constant 241 : i32
    %72 = tpu.dynamic_rotate %56 by %c241_i32_18 dim 1 : vector<8x256xf32>, i32 -> vector<8x256xf32>
    %73 = vector.broadcast %7 : vector<1x256xf32> to vector<8x256xf32>
    %74 = arith.mulf %72, %73 : vector<8x256xf32>
    %c240_i32_19 = arith.constant 240 : i32
    %75 = tpu.dynamic_rotate %56 by %c240_i32_19 dim 1 : vector<8x256xf32>, i32 -> vector<8x256xf32>
    %76 = vector.broadcast %8 : vector<1x256xf32> to vector<8x256xf32>
    %77 = arith.mulf %75, %76 : vector<8x256xf32>
    %c239_i32_20 = arith.constant 239 : i32
    %78 = tpu.dynamic_rotate %56 by %c239_i32_20 dim 1 : vector<8x256xf32>, i32 -> vector<8x256xf32>
    %79 = vector.broadcast %9 : vector<1x256xf32> to vector<8x256xf32>
    %80 = arith.mulf %78, %79 : vector<8x256xf32>
    %81 = tpu.concatenate %59, %62, %65, %68, %56, %71, %74, %77, %80 in 0 : vector<8x256xf32>, vector<8x256xf32>, vector<8x256xf32>, vector<8x256xf32>, vector<8x256xf32>, vector<8x256xf32>, vector<8x256xf32>, vector<8x256xf32>, vector<8x256xf32> -> vector<72x256xf32>
    %c0_21 = arith.constant 0 : index
    %c0_22 = arith.constant 0 : index
    %82 = vector.load %arg6[%c0_21, %c0_22] : memref<8x72xbf16, #tpu.memory_space<vmem>>, vector<8x72xbf16>
    %83 = arith.truncf %81 : vector<72x256xf32> to vector<72x256xbf16>
    %cst_23 = arith.constant dense<0.000000e+00> : vector<8x256xf32>
    %84 = tpu.matmul %82, %83, %cst_23 {dimension_numbers = #tpu.dot_dimension_numbers<[1], [0], [0], [1], [0, 0, 1, 1], [], []>} : vector<8x72xbf16>, vector<72x256xbf16>, vector<8x256xf32> -> vector<8x256xf32>
    %cst_24 = arith.constant 0.000000e+00 : f32
    %85 = vector.broadcast %cst_24 : f32 to vector<8x256xf32>
    %86 = arith.cmpf oge, %84, %85 : vector<8x256xf32>
    %cst_25 = arith.constant 2.000000e-01 : f32
    %87 = vector.broadcast %cst_25 : f32 to vector<8x256xf32>
    %88 = arith.mulf %87, %84 : vector<8x256xf32>
    %89 = arith.select %86, %84, %88 : vector<8x256xi1>, vector<8x256xf32>
    %c0_26 = arith.constant 0 : index
    %c0_27 = arith.constant 0 : index
    %90 = vector.load %arg7[%c0_26, %c0_27] : memref<8x8xbf16, #tpu.memory_space<vmem>>, vector<8x8xbf16>
    %91 = arith.truncf %89 : vector<8x256xf32> to vector<8x256xbf16>
    %cst_28 = arith.constant dense<0.000000e+00> : vector<8x256xf32>
    %92 = tpu.matmul %90, %91, %cst_28 {dimension_numbers = #tpu.dot_dimension_numbers<[1], [0], [0], [1], [0, 0, 1, 1], [], []>} : vector<8x8xbf16>, vector<8x256xbf16>, vector<8x256xf32> -> vector<8x256xf32>
    %93 = arith.addf %92, %0 : vector<8x256xf32>
    %c0_29 = arith.constant 0 : index
    %c0_30 = arith.constant 0 : index
    %94 = vector.load %arg8[%c0_29, %c0_30] : memref<8x256xf32, #tpu.memory_space<vmem>>, vector<8x256xf32>
    tpu.vector_store %arg8[%c0_29, %c0_30], %93 {strides = array<i32>} : memref<8x256xf32, #tpu.memory_space<vmem>>, vector<8x256xf32>,
    return
  }
  func.func @transform_0(%arg0: i32) -> (i32, i32) {
    %c0_i32 = arith.constant 0 : i32
    %c0_i32_0 = arith.constant 0 : i32
    return %c0_i32, %arg0 : i32, i32
  }
  func.func @transform_1(%arg0: i32) -> (i32, i32) {
    %c0_i32 = arith.constant 0 : i32
    %c0_i32_0 = arith.constant 0 : i32
    %c0_i32_1 = arith.constant 0 : i32
    return %c0_i32, %c0_i32_0 : i32, i32
  }
  func.func @transform_2(%arg0: i32) -> (i32, i32) {
    %c0_i32 = arith.constant 0 : i32
    %c0_i32_0 = arith.constant 0 : i32
    %c0_i32_1 = arith.constant 0 : i32
    return %c0_i32, %c0_i32_0 : i32, i32
  }
  func.func @transform_3(%arg0: i32) -> (i32, i32) {
    %c0_i32 = arith.constant 0 : i32
    %c0_i32_0 = arith.constant 0 : i32
    %c0_i32_1 = arith.constant 0 : i32
    return %c0_i32, %c0_i32_0 : i32, i32
  }
  func.func @transform_4(%arg0: i32) -> (i32, i32) {
    %c0_i32 = arith.constant 0 : i32
    %c0_i32_0 = arith.constant 0 : i32
    %c0_i32_1 = arith.constant 0 : i32
    return %c0_i32, %c0_i32_0 : i32, i32
  }
  func.func @transform_5(%arg0: i32) -> (i32, i32) {
    %c0_i32 = arith.constant 0 : i32
    %c0_i32_0 = arith.constant 0 : i32
    %c0_i32_1 = arith.constant 0 : i32
    return %c0_i32, %c0_i32_0 : i32, i32
  }
  func.func @transform_6(%arg0: i32) -> (i32, i32) {
    %c0_i32 = arith.constant 0 : i32
    %c0_i32_0 = arith.constant 0 : i32
    %c0_i32_1 = arith.constant 0 : i32
    return %c0_i32, %c0_i32_0 : i32, i32
  }
  func.func @transform_7(%arg0: i32) -> (i32, i32) {
    %c0_i32 = arith.constant 0 : i32
    %c0_i32_0 = arith.constant 0 : i32
    return %c0_i32, %arg0 : i32, i32
  }
}

</mosaic_0001>

<llo_original>
// kernel: tpu_custom_call.1
$region0: #{tpu_custom_call.1}
  #allocation0 [shape = 'u32[]', space=smem, size = 0x4, offset = 0x4, fixed_abs, tag = 'smem constant byte address 0x4 - core index']
  #allocation1 [shape = 'u32[144,128]{1,0:T(1,128)}', space=vmem, size = 0x12000, scoped, tag = 'internal scratch']
  %s0 = inlined_call_operand.hbm [shape: f32[8,512], index: 0, kind: input, shape index: {}]
  %s1 = inlined_call_operand.hbm [shape: f32[8,256], index: 1, kind: input, shape index: {}]
  %s2 = inlined_call_operand.vmem [shape: bf16[8,8], index: 2, kind: input, shape index: {}]
  %s3 = inlined_call_operand.vmem [shape: bf16[16,72], index: 3, kind: input, shape index: {}]
  %s4 = inlined_call_operand.vmem [shape: f32[8,1], index: 4, kind: input, shape index: {}]
  %s5 = inlined_call_operand.vmem [shape: bf16[8,72], index: 5, kind: input, shape index: {}]
  %s6 = inlined_call_operand.vmem [shape: bf16[8,8], index: 6, kind: input, shape index: {}]
  %s7 = inlined_call_operand.hbm [shape: f32[8,512], index: 7, kind: output, shape index: {}]
  %s8 = sld [smem:[#allocation0]]
  $region69: #{tpu_custom_call.1} parent=0
    _
  %s10 = ssub.s32 1, %s8
  %s11 = scalar_select 0, %s10, %s8
  $region1: #{tpu_custom_call.1} parent=0
    #allocation2 [shape = 'u8[16384]{0}', space=vmem, size = 0x4000, scoped, tag = 'input window, operand 0']
    #allocation3 [shape = 's32[2]{0}', space=sflag, size = 0x8, scoped, tag = 'scoped memory for tpu_custom_call.1']
    #allocation4 [shape = 's32[2]{0}', space=sflag, size = 0x8, scoped, tag = 'scoped memory for tpu_custom_call.1']
    #allocation5 [shape = 'u8[8192]{0}', space=vmem, size = 0x2000, scoped, tag = 'input window, operand 1, single buffered']
    #allocation6 [shape = 's32[1]{0}', space=sflag, size = 0x4, scoped, tag = 'scoped memory for tpu_custom_call.1']
    #allocation7 [shape = 'u8[16384]{0}', space=vmem, size = 0x4000, scoped, tag = 'output window, operand 0']
    %12 = vsyncpa [#allocation3], 0
    %s13 = scalar_lea.sflag [#allocation3], 1
    %14 = vsyncpa %s13, 0
    %15 = vsyncpa [#allocation6], 0
    %16 = vsyncpa [#allocation4], 0
    %s17 = scalar_lea.sflag [#allocation4], 1
    %18 = vsyncpa %s17, 0
    loop: start=0, step=1, limit=4
    $region2: #{tpu_custom_call.1} parent=1 // loop_pre_header
      _
    $region3: #{tpu_custom_call.1} parent=1 // loop_header
      %s20 = sphi 0, %s24
      %p21 = scmp.ge.s32.totalorder %s20, 4
      %s30 = sphi 0, %s32
      %s33 = sphi 0, %s30
      %s34 = sphi 0, %s33
      %s50 = sphi 0, %s34
      %s54 = sphi 0, %s54
      %s56 = sphi 0, %s54
      %s57 = sphi 0, %s56
      %s71 = sphi 0, %s57
      %s75 = sphi 0, %s75
      %s77 = sphi 0, %s75
      %s78 = sphi 0, %s77
      %s92 = sphi 0, %s78
      %s96 = sphi 0, %s96
      %s98 = sphi 0, %s96
      %s99 = sphi 0, %s98
      %s113 = sphi 0, %s99
      %s117 = sphi 0, %s117
      %s119 = sphi 0, %s117
      %s120 = sphi 0, %s119
      %s134 = sphi 0, %s120
      %s138 = sphi 0, %s138
      %s140 = sphi 0, %s138
      %s141 = sphi 0, %s140
      %s155 = sphi 0, %s141
      %s159 = sphi 0, %s159
      %s161 = sphi 0, %s159
      %s162 = sphi 0, %s161
      %s176 = sphi 0, %s162
      %s182 = sphi 0, %s184
      %s185 = sphi 0, %s182
      %s186 = sphi 0, %s185
      %s202 = sphi 0, %s186
    $region4: #{tpu_custom_call.1} parent=1 // loop_header_branch
      %23 = sbr.rel (%p21) target = $region8
    $region5: #{tpu_custom_call.1} parent=1 // loop_body
      %s25 = ssub.s32 %s20, 1
      %s26 = ssub.s32 %s20, 2
      %s27 = sadd.s32 %s20, 1
      %s28 = ssub.s32 %s20, %s27
      %p29 = scmp.eq.s32.totalorder %s28, 0
      %s31 = sadd.s32 %s30, 1
      %s32 = scalar_select %p29, %s30, %s31
      %p35 = pneg %p29
      %p36 = scmp.eq.s32.totalorder %s20, 1
      %p37 = por %p35, %p36
      %p38 = scmp.ne.s32.totalorder %s30, %s33
      %p39 = scmp.eq.s32.totalorder %s20, 0
      %p40 = por %p38, %p39
      %p41 = scmp.ne.s32.totalorder %s30, %s33
      %p42 = scmp.eq.s32.totalorder %s25, 1
      %p43 = por %p41, %p42
      %p44 = scmp.ne.s32.totalorder %s33, %s34
      %p45 = scmp.eq.s32.totalorder %s25, 0
      %p46 = por %p44, %p45
      %p47 = scmp.ne.s32.totalorder %s33, %s34
      %p48 = scmp.eq.s32.totalorder %s26, 1
      %p49 = por %p47, %p48
      %p51 = scmp.ne.s32.totalorder %s34, %s50
      %p52 = scmp.eq.s32.totalorder %s26, 0
      %p53 = por %p51, %p52
      %s55 = sadd.s32 %s54, 1
      %p58 = scmp.eq.s32.totalorder %s20, 1
      %p59 = scmp.ne.s32.totalorder %s54, %s56
      %p60 = scmp.eq.s32.totalorder %s20, 0
      %p61 = por %p59, %p60
      %p62 = scmp.ne.s32.totalorder %s54, %s56
      %p63 = scmp.eq.s32.totalorder %s25, 1
      %p64 = por %p62, %p63
      %p65 = scmp.ne.s32.totalorder %s56, %s57
      %p66 = scmp.eq.s32.totalorder %s25, 0
      %p67 = por %p65, %p66
      %p68 = scmp.ne.s32.totalorder %s56, %s57
      %p69 = scmp.eq.s32.totalorder %s26, 1
      %p70 = por %p68, %p69
      %p72 = scmp.ne.s32.totalorder %s57, %s71
      %p73 = scmp.eq.s32.totalorder %s26, 0
      %p74 = por %p72, %p73
      %s76 = sadd.s32 %s75, 1
      %p79 = scmp.eq.s32.totalorder %s20, 1
      %p80 = scmp.ne.s32.totalorder %s75, %s77
      %p81 = scmp.eq.s32.totalorder %s20, 0
      %p82 = por %p80, %p81
      %p83 = scmp.ne.s32.totalorder %s75, %s77
      %p84 = scmp.eq.s32.totalorder %s25, 1
      %p85 = por %p83, %p84
      %p86 = scmp.ne.s32.totalorder %s77, %s78
      %p87 = scmp.eq.s32.totalorder %s25, 0
      %p88 = por %p86, %p87
      %p89 = scmp.ne.s32.totalorder %s77, %s78
      %p90 = scmp.eq.s32.totalorder %s26, 1
      %p91 = por %p89, %p90
      %p93 = scmp.ne.s32.totalorder %s78, %s92
      %p94 = scmp.eq.s32.totalorder %s26, 0
      %p95 = por %p93, %p94
      %s97 = sadd.s32 %s96, 1
      %p100 = scmp.eq.s32.totalorder %s20, 1
      %p101 = scmp.ne.s32.totalorder %s96, %s98
      %p102 = scmp.eq.s32.totalorder %s20, 0
      %p103 = por %p101, %p102
      %p104 = scmp.ne.s32.totalorder %s96, %s98
      %p105 = scmp.eq.s32.totalorder %s25, 1
      %p106 = por %p104, %p105
      %p107 = scmp.ne.s32.totalorder %s98, %s99
      %p108 = scmp.eq.s32.totalorder %s25, 0
      %p109 = por %p107, %p108
      %p110 = scmp.ne.s32.totalorder %s98, %s99
      %p111 = scmp.eq.s32.totalorder %s26, 1
      %p112 = por %p110, %p111
      %p114 = scmp.ne.s32.totalorder %s99, %s113
      %p115 = scmp.eq.s32.totalorder %s26, 0
      %p116 = por %p114, %p115
      %s118 = sadd.s32 %s117, 1
      %p121 = scmp.eq.s32.totalorder %s20, 1
      %p122 = scmp.ne.s32.totalorder %s117, %s119
      %p123 = scmp.eq.s32.totalorder %s20, 0
      %p124 = por %p122, %p123
      %p125 = scmp.ne.s32.totalorder %s117, %s119
      %p126 = scmp.eq.s32.totalorder %s25, 1
      %p127 = por %p125, %p126
      %p128 = scmp.ne.s32.totalorder %s119, %s120
      %p129 = scmp.eq.s32.totalorder %s25, 0
      %p130 = por %p128, %p129
      %p131 = scmp.ne.s32.totalorder %s119, %s120
      %p132 = scmp.eq.s32.totalorder %s26, 1
      %p133 = por %p131, %p132
      %p135 = scmp.ne.s32.totalorder %s120, %s134
      %p136 = scmp.eq.s32.totalorder %s26, 0
      %p137 = por %p135, %p136
      %s139 = sadd.s32 %s138, 1
      %p142 = scmp.eq.s32.totalorder %s20, 1
      %p143 = scmp.ne.s32.totalorder %s138, %s140
      %p144 = scmp.eq.s32.totalorder %s20, 0
      %p145 = por %p143, %p144
      %p146 = scmp.ne.s32.totalorder %s138, %s140
      %p147 = scmp.eq.s32.totalorder %s25, 1
      %p148 = por %p146, %p147
      %p149 = scmp.ne.s32.totalorder %s140, %s141
      %p150 = scmp.eq.s32.totalorder %s25, 0
      %p151 = por %p149, %p150
      %p152 = scmp.ne.s32.totalorder %s140, %s141
      %p153 = scmp.eq.s32.totalorder %s26, 1
      %p154 = por %p152, %p153
      %p156 = scmp.ne.s32.totalorder %s141, %s155
      %p157 = scmp.eq.s32.totalorder %s26, 0
      %p158 = por %p156, %p157
      %s160 = sadd.s32 %s159, 1
      %p163 = scmp.eq.s32.totalorder %s20, 1
      %p164 = scmp.ne.s32.totalorder %s159, %s161
      %p165 = scmp.eq.s32.totalorder %s20, 0
      %p166 = por %p164, %p165
      %p167 = scmp.ne.s32.totalorder %s159, %s161
      %p168 = scmp.eq.s32.totalorder %s25, 1
      %p169 = por %p167, %p168
      %p170 = scmp.ne.s32.totalorder %s161, %s162
      %p171 = scmp.eq.s32.totalorder %s25, 0
      %p172 = por %p170, %p171
      %p173 = scmp.ne.s32.totalorder %s161, %s162
      %p174 = scmp.eq.s32.totalorder %s26, 1
      %p175 = por %p173, %p174
      %p177 = scmp.ne.s32.totalorder %s162, %s176
      %p178 = scmp.eq.s32.totalorder %s26, 0
      %p179 = por %p177, %p178
      %s180 = ssub.s32 %s20, %s27
      %p181 = scmp.eq.s32.totalorder %s180, 0
      %s183 = sadd.s32 %s182, 1
      %s184 = scalar_select %p181, %s182, %s183
      %p187 = pneg %p181
      %p188 = scmp.eq.s32.totalorder %s20, 1
      %p189 = por %p187, %p188
      %p190 = scmp.ne.s32.totalorder %s182, %s185
      %p191 = scmp.eq.s32.totalorder %s20, 0
      %p192 = por %p190, %p191
      %p193 = scmp.ne.s32.totalorder %s182, %s185
      %p194 = scmp.eq.s32.totalorder %s25, 1
      %p195 = por %p193, %p194
      %p196 = scmp.ne.s32.totalorder %s185, %s186
      %p197 = scmp.eq.s32.totalorder %s25, 0
      %p198 = por %p196, %p197
      %p199 = scmp.ne.s32.totalorder %s185, %s186
      %p200 = scmp.eq.s32.totalorder %s26, 1
      %p201 = por %p199, %p200
      %p203 = scmp.ne.s32.totalorder %s186, %s202
      %p204 = scmp.eq.s32.totalorder %s26, 0
      %p205 = por %p203, %p204
      %p206 = scmp.le.s32.totalorder 1, %s20
      %p207 = scmp.lt.s32.totalorder %s20, 3
      %p208 = pnand %p206, %p207
      %p209 = pneg %p208
      // Predicated region
      $region9: #{tpu_custom_call.1} parent=5 // pred_check
        _
      $region10: #{tpu_custom_call.1} parent=5 // pred_check_branch
        %211 = sbr.rel (%p208) target = $region12
      $region11: #{tpu_custom_call.1} parent=5 // pred_region
        %s212 = ssub.s32 %s20, 1
        // Predicated region
        $region13: #{tpu_custom_call.1} parent=11 // pred_check
          %p213 = pneg %p67
        $region14: #{tpu_custom_call.1} parent=11 // pred_check_branch
          %215 = sbr.rel (%p213) target = $region16
        $region15: #{tpu_custom_call.1} parent=11 // pred_region
          %s217 = ssub.s32 256, 256
          %218 = vsyncadd [#allocation6], %s217
          %s220 = sshll.u32 [#allocation5], 4
          %s221 = int_to_ptr.vmem [resolvable:$true] %s220
          %223 = dma.hbm_to_vmem [thread:$0]  %s1, 256, %s221, [#allocation6]
        $region16: #{tpu_custom_call.1} parent=11 // pred_fallthru
          _
        // Predicated region
        $region17: #{tpu_custom_call.1} parent=11 // pred_check
          %p224 = pneg %p88
        $region18: #{tpu_custom_call.1} parent=11 // pred_check_branch
          %226 = sbr.rel (%p224) target = $region20
        $region19: #{tpu_custom_call.1} parent=11 // pred_region
          _
        $region20: #{tpu_custom_call.1} parent=11 // pred_fallthru
          _
        // Predicated region
        $region21: #{tpu_custom_call.1} parent=11 // pred_check
          %p227 = pneg %p109
        $region22: #{tpu_custom_call.1} parent=11 // pred_check_branch
          %229 = sbr.rel (%p227) target = $region24
        $region23: #{tpu_custom_call.1} parent=11 // pred_region
          _
        $region24: #{tpu_custom_call.1} parent=11 // pred_fallthru
          _
        // Predicated region
        $region25: #{tpu_custom_call.1} parent=11 // pred_check
          %p230 = pneg %p130
        $region26: #{tpu_custom_call.1} parent=11 // pred_check_branch
          %232 = sbr.rel (%p230) target = $region28
        $region27: #{tpu_custom_call.1} parent=11 // pred_region
          _
        $region28: #{tpu_custom_call.1} parent=11 // pred_fallthru
          _
        // Predicated region
        $region29: #{tpu_custom_call.1} parent=11 // pred_check
          %p233 = pneg %p151
        $region30: #{tpu_custom_call.1} parent=11 // pred_check_branch
          %235 = sbr.rel (%p233) target = $region32
        $region31: #{tpu_custom_call.1} parent=11 // pred_region
          _
        $region32: #{tpu_custom_call.1} parent=11 // pred_fallthru
          _
        // Predicated region
        $region33: #{tpu_custom_call.1} parent=11 // pred_check
          %p236 = pneg %p172
        $region34: #{tpu_custom_call.1} parent=11 // pred_check_branch
          %238 = sbr.rel (%p236) target = $region36
        $region35: #{tpu_custom_call.1} parent=11 // pred_region
          _
        $region36: #{tpu_custom_call.1} parent=11 // pred_fallthru
          _
      $region12: #{tpu_custom_call.1} parent=5 // pred_fallthru
        _
      %p239 = scmp.lt.s32.totalorder %s20, 2
      // Predicated region
      $region37: #{tpu_custom_call.1} parent=5 // pred_check
        %p240 = pneg %p239
      $region38: #{tpu_custom_call.1} parent=5 // pred_check_branch
        %242 = sbr.rel (%p240) target = $region40
      $region39: #{tpu_custom_call.1} parent=5 // pred_region
        // Predicated region
        $region41: #{tpu_custom_call.1} parent=39 // pred_check
          %p243 = pneg %p40
        $region42: #{tpu_custom_call.1} parent=39 // pred_check_branch
          %245 = sbr.rel (%p243) target = $region44
        $region43: #{tpu_custom_call.1} parent=39 // pred_region
          %s246 = sand.u32 %s30, 1
          %s247 = scalar_lea.sflag [#allocation3], %s246
          %s248 = sand.u32 %s30, 1
          %s249 = smul.addr %s248, 16
          %s250 = scalar_lea.vmem [#allocation2], %s249
          %s251 = smul.u32 2, %s20
          %s253 = ssub.s32 256, 256
          %254 = vsyncadd %s247, %s253
          %s255 = smul.addr %s251, 128
          %s256 = scalar_lea.hbm %s0, %s255
          %s258 = sshll.u32 %s250, 4
          %s259 = int_to_ptr.vmem [resolvable:$true] %s258
          %261 = dma.hbm_to_vmem [thread:$0]  %s256, 256, %s259, %s247
        $region44: #{tpu_custom_call.1} parent=39 // pred_fallthru
          _
      $region40: #{tpu_custom_call.1} parent=5 // pred_fallthru
        _
      %p262 = scmp.le.s32.totalorder 1, %s20
      %p263 = scmp.lt.s32.totalorder %s20, 3
      %p264 = pnand %p262, %p263
      %p265 = pneg %p264
      // Predicated region
      $region45: #{tpu_custom_call.1} parent=5 // pred_check
        _
      $region46: #{tpu_custom_call.1} parent=5 // pred_check_branch
        %267 = sbr.rel (%p264) target = $region48
      $region47: #{tpu_custom_call.1} parent=5 // pred_region
        %s268 = ssub.s32 %s20, 1
        %s269 = sand.u32 %s33, 1
        %s270 = scalar_lea.sflag [#allocation3], %s269
        %s271 = sand.u32 %s33, 1
        %s272 = smul.addr %s271, 16
        %s273 = scalar_lea.vmem [#allocation2], %s272
        // Predicated region
        $region49: #{tpu_custom_call.1} parent=47 // pred_check
          %p274 = pneg %p46
        $region50: #{tpu_custom_call.1} parent=47 // pred_check_branch
          %276 = sbr.rel (%p274) target = $region52
        $region51: #{tpu_custom_call.1} parent=47 // pred_region
          %277 = dma.done %s270, 256
        $region52: #{tpu_custom_call.1} parent=47 // pred_fallthru
          _
        // Predicated region
        $region53: #{tpu_custom_call.1} parent=47 // pred_check
          %p278 = pneg %p67
        $region54: #{tpu_custom_call.1} parent=47 // pred_check_branch
          %280 = sbr.rel (%p278) target = $region56
        $region55: #{tpu_custom_call.1} parent=47 // pred_region
          %281 = dma.done [#allocation6], 256
        $region56: #{tpu_custom_call.1} parent=47 // pred_fallthru
          _
        %s282 = sand.u32 %s33, 1
        %s283 = scalar_lea.sflag [#allocation3], %s282
        %s284 = sand.u32 %s33, 1
        %s285 = smul.addr %s284, 16
        %s286 = scalar_lea.vmem [#allocation2], %s285
        %p287 = pneg %p46
        %p288 = pneg %p43
        %p289 = pneg %p67
        %p290 = pneg %p64
        %p291 = pneg %p88
        %p292 = pneg %p85
        %p293 = pneg %p109
        %p294 = pneg %p106
        %p295 = pneg %p130
        %p296 = pneg %p127
        %p297 = pneg %p151
        %p298 = pneg %p148
        %p299 = pneg %p172
        %p300 = pneg %p169
        %p301 = pneg %p198
        %p302 = pneg %p195
        %s303 = sand.u32 %s185, 1
        %s304 = scalar_lea.sflag [#allocation4], %s303
        %s305 = sand.u32 %s185, 1
        %s306 = smul.addr %s305, 16
        %s307 = scalar_lea.vmem [#allocation7], %s306
        %s308 = smul.u32 2, %s25
        %s309 = smul.u32 2, %s25
        %v311 = vld [vmem:[%s273] sm:$0xff]
        %v312 = vld [vmem:[%s273 + $0x8] sm:$0xff]
        %v313 = vld [vmem:[#allocation5] sm:$0xff]
        %v314 = vld [vmem:[#allocation5 + $0x8] sm:$0xff]
        %v315 = vld [vmem:[%s2] sm:$0xf]
        %v316 = vpack.c.bf16 %v311, %v311
        %v317 = vpack.c.bf16 %v312, %v312
        %vm318 = vcmask 64512
        %v320 = vsel %vm318, %v315, 0
        %vm322 = vcmask 1043456
        %v324 = vsel %vm322, %v316, 0
        %v327 = vsel %vm322, %v317, 0
        %329 = vmatprep.subr.bf16.mxu0 %v327
        %330 = vmatpush1.bf16.msra.mxu0 %v324
        %331 = vmatprep.subr.bf16.mxu0 0
        %332 = vmatpush1.bf16.msra.mxu0 0
        %333 = vmatprep.subr.bf16.mxu0 0
        %334 = vmatpush1.bf16.msra.mxu0 0
        %335 = vmatprep.subr.bf16.mxu0 0
        %336 = vmatpush1.bf16.msra.mxu0 0
        %337 = vmatprep.subr.bf16.mxu0 0
        %338 = vmatpush1.bf16.msra.mxu0 0
        %339 = vmatprep.subr.bf16.mxu0 0
        %340 = vmatpush1.bf16.msra.mxu0 0
        %341 = vmatprep.subr.bf16.mxu0 0
        %342 = vmatpush1.bf16.msra.mxu0 0
        %343 = vmatprep.subr.bf16.mxu0 0
        %344 = vmatpush1.bf16.msra.mxu0 0
        %345 = vmatprep.subr.bf16.mxu0 0
        %346 = vmatpush1.bf16.msra.mxu0 0
        %347 = vmatprep.subr.bf16.mxu0 0
        %348 = vmatpush1.bf16.msra.mxu0 0
        %349 = vmatprep.subr.bf16.mxu0 0
        %350 = vmatpush1.bf16.msra.mxu0 0
        %351 = vmatprep.subr.bf16.mxu0 0
        %352 = vmatpush1.bf16.msra.mxu0 0
        %353 = vmatprep.subr.bf16.mxu0 0
        %354 = vmatpush1.bf16.msra.mxu0 0
        %355 = vmatprep.subr.bf16.mxu0 0
        %356 = vmatpush1.bf16.msra.mxu0 0
        %357 = vmatprep.subr.bf16.mxu0 0
        %358 = vmatpush1.bf16.msra.mxu0 0
        %359 = vmatprep.subr.bf16.mxu0 0
        %360 = vmatpush1.bf16.msra.mxu0 0
        %361 = vmatprep.mubr.bf16.mxu0 0
        %362 = vmatmul.mubr.bf16.gmra.mrb[0].mxu0 %v320
        %v363 = vpop.f32.mrb[0].mxu0
        %v364 = vadd.f32 0.0, %v363
        %v365 = vpop.f32.mrb[0].mxu0
        %v366 = vadd.f32 0.0, %v365
        %v367 = vpop.f32.mrb[0].mxu0
        %v368 = vpop.f32.mrb[0].mxu0
        %369 = vdwg.mxu0
        %vm370 = vcmp.ge.f32.partialorder %v364, 0.0
        %vm371 = vcmp.ge.f32.partialorder %v366, 0.0
        %v372 = vmul.f32 %v364, 0.2
        %v373 = vmul.f32 %v366, 0.2
        %v374 = vsel %vm370, %v364, %v372
        %v375 = vsel %vm371, %v366, %v373
        %376 = vrot.lane.b32.xlu0 %v374, 17
        %v377 = vpop.permute.xlu0 %376
        %378 = vrot.lane.b32.xlu0 %v375, 17
        %v379 = vpop.permute.xlu0 %378
        %v380 = vlaneseq
        %v381 = vand.u32 %v380, 127
        %vm382 = vcmp.lt.s32.totalorder %v381, 17
        %v383 = vsel %vm382, %v377, %v379
        %v384 = vsel %vm382, %v379, %v377
        %v385 = vlaneseq
        %v386 = vshrl.u32 %v385, 7
        %v387 = vsub.s32 0, %v386
        %v388 = vrot.slane %v313, %v387
        %v389 = vlaneseq
        %v390 = vshrl.u32 %v389, 7
        %v391 = vsub.s32 0, %v390
        %v392 = vrot.slane %v314, %v391
        %v393 = vmul.f32 %v384, %v388
        %v394 = vmul.f32 %v383, %v392
        %395 = vrot.lane.b32.xlu0 %v374, 16
        %v396 = vpop.permute.xlu0 %395
        %397 = vrot.lane.b32.xlu0 %v375, 16
        %v398 = vpop.permute.xlu0 %397
        %vm399 = vcmp.lt.s32.totalorder %v381, 16
        %v400 = vsel %vm399, %v396, %v398
        %v401 = vsel %vm399, %v398, %v396
        %v402 = vlaneseq
        %v403 = vshrl.u32 %v402, 7
        %v404 = vsub.s32 1, %v403
        %v405 = vrot.slane %v313, %v404
        %v406 = vlaneseq
        %v407 = vshrl.u32 %v406, 7
        %v408 = vsub.s32 1, %v407
        %v409 = vrot.slane %v314, %v408
        %v410 = vmul.f32 %v401, %v405
        %v411 = vmul.f32 %v400, %v409
        %412 = vrot.lane.b32.xlu0 %v374, 15
        %v413 = vpop.permute.xlu0 %412
        %414 = vrot.lane.b32.xlu0 %v375, 15
        %v415 = vpop.permute.xlu0 %414
        %vm416 = vcmp.lt.s32.totalorder %v381, 15
        %v417 = vsel %vm416, %v413, %v415
        %v418 = vsel %vm416, %v415, %v413
        %v419 = vlaneseq
        %v420 = vshrl.u32 %v419, 7
        %v421 = vsub.s32 2, %v420
        %v422 = vrot.slane %v313, %v421
        %v423 = vlaneseq
        %v424 = vshrl.u32 %v423, 7
        %v425 = vsub.s32 2, %v424
        %v426 = vrot.slane %v314, %v425
        %v427 = vmul.f32 %v418, %v422
        %v428 = vmul.f32 %v417, %v426
        %429 = vrot.lane.b32.xlu0 %v374, 1
        %v430 = vpop.permute.xlu0 %429
        %431 = vrot.lane.b32.xlu0 %v375, 1
        %v432 = vpop.permute.xlu0 %431
        %vm433 = vcmp.lt.s32.totalorder %v381, 1
        %v434 = vsel %vm433, %v430, %v432
        %v435 = vsel %vm433, %v432, %v430
        %v436 = vlaneseq
        %v437 = vshrl.u32 %v436, 7
        %v438 = vsub.s32 3, %v437
        %v439 = vrot.slane %v313, %v438
        %v440 = vlaneseq
        %v441 = vshrl.u32 %v440, 7
        %v442 = vsub.s32 3, %v441
        %v443 = vrot.slane %v314, %v442
        %v444 = vmul.f32 %v435, %v439
        %v445 = vmul.f32 %v434, %v443
        %446 = vrot.lane.b32.xlu0 %v374, 127
        %v447 = vpop.permute.xlu0 %446
        %448 = vrot.lane.b32.xlu0 %v375, 127
        %v449 = vpop.permute.xlu0 %448
        %vm450 = vcmp.lt.s32.totalorder %v381, 127
        %v451 = vsel %vm450, %v447, %v449
        %v452 = vsel %vm450, %v449, %v447
        %v453 = vlaneseq
        %v454 = vshrl.u32 %v453, 7
        %v455 = vsub.s32 4, %v454
        %v456 = vrot.slane %v313, %v455
        %v457 = vlaneseq
        %v458 = vshrl.u32 %v457, 7
        %v459 = vsub.s32 4, %v458
        %v460 = vrot.slane %v314, %v459
        %v461 = vmul.f32 %v451, %v456
        %v462 = vmul.f32 %v452, %v460
        %463 = vrot.lane.b32.xlu0 %v374, 113
        %v464 = vpop.permute.xlu0 %463
        %465 = vrot.lane.b32.xlu0 %v375, 113
        %v466 = vpop.permute.xlu0 %465
        %vm467 = vcmp.lt.s32.totalorder %v381, 113
        %v468 = vsel %vm467, %v464, %v466
        %v469 = vsel %vm467, %v466, %v464
        %v470 = vlaneseq
        %v471 = vshrl.u32 %v470, 7
        %v472 = vsub.s32 5, %v471
        %v473 = vrot.slane %v313, %v472
        %v474 = vlaneseq
        %v475 = vshrl.u32 %v474, 7
        %v476 = vsub.s32 5, %v475
        %v477 = vrot.slane %v314, %v476
        %v478 = vmul.f32 %v468, %v473
        %v479 = vmul.f32 %v469, %v477
        %480 = vrot.lane.b32.xlu0 %v374, 112
        %v481 = vpop.permute.xlu0 %480
        %482 = vrot.lane.b32.xlu0 %v375, 112
        %v483 = vpop.permute.xlu0 %482
        %vm484 = vcmp.lt.s32.totalorder %v381, 112
        %v485 = vsel %vm484, %v481, %v483
        %v486 = vsel %vm484, %v483, %v481
        %v487 = vlaneseq
        %v488 = vshrl.u32 %v487, 7
        %v489 = vsub.s32 6, %v488
        %v490 = vrot.slane %v313, %v489
        %v491 = vlaneseq
        %v492 = vshrl.u32 %v491, 7
        %v493 = vsub.s32 6, %v492
        %v494 = vrot.slane %v314, %v493
        %v495 = vmul.f32 %v485, %v490
        %v496 = vmul.f32 %v486, %v494
        %497 = vrot.lane.b32.xlu0 %v374, 111
        %v498 = vpop.permute.xlu0 %497
        %499 = vrot.lane.b32.xlu0 %v375, 111
        %v500 = vpop.permute.xlu0 %499
        %vm501 = vcmp.lt.s32.totalorder %v381, 111
        %v502 = vsel %vm501, %v498, %v500
        %v503 = vsel %vm501, %v500, %v498
        %v504 = vlaneseq
        %v505 = vshrl.u32 %v504, 7
        %v506 = vsub.s32 7, %v505
        %v507 = vrot.slane %v313, %v506
        %v508 = vlaneseq
        %v509 = vshrl.u32 %v508, 7
        %v510 = vsub.s32 7, %v509
        %v511 = vrot.slane %v314, %v510
        %v512 = vmul.f32 %v502, %v507
        %v513 = vmul.f32 %v503, %v511
        %v514 = vld [vmem:[%s3] sm:$0xf]
        %v515 = vld [vmem:[%s3 + $0x4] sm:$0xf]
        %v516 = vpack.c.bf16 %v410, %v393
        %v517 = vpack.c.bf16 %v411, %v394
        %v518 = vpack.c.bf16 %v444, %v427
        %v519 = vpack.c.bf16 %v445, %v428
        %v520 = vpack.c.bf16 %v461, %v374
        %v521 = vpack.c.bf16 %v462, %v375
        %v522 = vpack.c.bf16 %v495, %v478
        %v523 = vpack.c.bf16 %v496, %v479
        %v524 = vpack.c.bf16 %v512, %v512
        %v525 = vpack.c.bf16 %v513, %v513
        %v528 = vunpack.c.l.b16 %v514
        %v529 = vunpack.c.l.b16 %v515
        %v530 = vpack.c.b16 %v529, %v528
        %vm531 = vcmask 588800
        %v533 = vsel %vm531, %v530, 0
        %v536 = vsel %vm322, %v524, 0
        %v539 = vsel %vm322, %v525, 0
        %541 = vmatprep.subr.bf16.mxu0 %v517
        %542 = vmatpush1.bf16.msra.mxu0 %v516
        %543 = vmatprep.subr.bf16.mxu0 %v519
        %544 = vmatpush1.bf16.msra.mxu0 %v518
        %545 = vmatprep.subr.bf16.mxu0 %v521
        %546 = vmatpush1.bf16.msra.mxu0 %v520
        %547 = vmatprep.subr.bf16.mxu0 %v523
        %548 = vmatpush1.bf16.msra.mxu0 %v522
        %549 = vmatprep.subr.bf16.mxu0 %v539
        %550 = vmatpush1.bf16.msra.mxu0 %v536
        %551 = vmatprep.subr.bf16.mxu0 0
        %552 = vmatpush1.bf16.msra.mxu0 0
        %553 = vmatprep.subr.bf16.mxu0 0
        %554 = vmatpush1.bf16.msra.mxu0 0
        %555 = vmatprep.subr.bf16.mxu0 0
        %556 = vmatpush1.bf16.msra.mxu0 0
        %557 = vmatprep.subr.bf16.mxu0 0
        %558 = vmatpush1.bf16.msra.mxu0 0
        %559 = vmatprep.subr.bf16.mxu0 0
        %560 = vmatpush1.bf16.msra.mxu0 0
        %561 = vmatprep.subr.bf16.mxu0 0
        %562 = vmatpush1.bf16.msra.mxu0 0
        %563 = vmatprep.subr.bf16.mxu0 0
        %564 = vmatpush1.bf16.msra.mxu0 0
        %565 = vmatprep.subr.bf16.mxu0 0
        %566 = vmatpush1.bf16.msra.mxu0 0
        %567 = vmatprep.subr.bf16.mxu0 0
        %568 = vmatpush1.bf16.msra.mxu0 0
        %569 = vmatprep.subr.bf16.mxu0 0
        %570 = vmatpush1.bf16.msra.mxu0 0
        %571 = vmatprep.subr.bf16.mxu0 0
        %572 = vmatpush1.bf16.msra.mxu0 0
        %573 = vmatprep.mubr.bf16.mxu0 0
        %574 = vmatmul.mubr.bf16.gmra.mrb[0].mxu0 %v533
        %v575 = vpop.f32.mrb[0].mxu0
        %v576 = vadd.f32 0.0, %v575
        %v577 = vpop.f32.mrb[0].mxu0
        %v578 = vadd.f32 0.0, %v577
        %v579 = vpop.f32.mrb[0].mxu0
        %v580 = vadd.f32 0.0, %v579
        %v581 = vpop.f32.mrb[0].mxu0
        %v582 = vadd.f32 0.0, %v581
        %583 = vdwg.mxu0
        %v584 = vld [vmem:[%s4] sm:$0xff]
        %586 = vset.pattern.permute.xlu0 0
        %587 = vperm.xlu0 %586, %v584
        %v588 = vpop.permute.xlu0 %587
        %v590 = vadd.f32 %v580, %v588
        %v591 = vadd.f32 %v582, %v588
        %v592 = vxor.u32 %v590, 2147483648
        %v593 = vxor.u32 %v591, 2147483648
        %v594 = vmul.f32 %v592, 1.442695
        %v595 = vpow.pop %v594
        %v596 = vmul.f32 %v593, 1.442695
        %v597 = vpow.pop %v596
        %v598 = vadd.f32 %v595, 1.0
        %v599 = vadd.f32 %v597, 1.0
        %v600 = vrcp.pop %v598
        %v601 = vmul.f32 1.0, %v600
        %v602 = vrcp.pop %v599
        %v603 = vmul.f32 1.0, %v602
        %v604 = vmul.f32 %v576, %v601
        %v605 = vmul.f32 %v578, %v603
        %606 = vrot.lane.b32.xlu0 %v604, 17
        %v607 = vpop.permute.xlu0 %606
        %608 = vrot.lane.b32.xlu0 %v605, 17
        %v609 = vpop.permute.xlu0 %608
        %v610 = vsel %vm382, %v607, %v609
        %v611 = vsel %vm382, %v609, %v607
        %v612 = vmul.f32 %v611, %v388
        %v613 = vmul.f32 %v610, %v392
        %614 = vrot.lane.b32.xlu0 %v604, 16
        %v615 = vpop.permute.xlu0 %614
        %616 = vrot.lane.b32.xlu0 %v605, 16
        %v617 = vpop.permute.xlu0 %616
        %v618 = vsel %vm399, %v615, %v617
        %v619 = vsel %vm399, %v617, %v615
        %v620 = vmul.f32 %v619, %v405
        %v621 = vmul.f32 %v618, %v409
        %622 = vrot.lane.b32.xlu0 %v604, 15
        %v623 = vpop.permute.xlu0 %622
        %624 = vrot.lane.b32.xlu0 %v605, 15
        %v625 = vpop.permute.xlu0 %624
        %v626 = vsel %vm416, %v623, %v625
        %v627 = vsel %vm416, %v625, %v623
        %v628 = vmul.f32 %v627, %v422
        %v629 = vmul.f32 %v626, %v426
        %630 = vrot.lane.b32.xlu0 %v604, 1
        %v631 = vpop.permute.xlu0 %630
        %632 = vrot.lane.b32.xlu0 %v605, 1
        %v633 = vpop.permute.xlu0 %632
        %v634 = vsel %vm433, %v631, %v633
        %v635 = vsel %vm433, %v633, %v631
        %v636 = vmul.f32 %v635, %v439
        %v637 = vmul.f32 %v634, %v443
        %638 = vrot.lane.b32.xlu0 %v604, 127
        %v639 = vpop.permute.xlu0 %638
        %640 = vrot.lane.b32.xlu0 %v605, 127
        %v641 = vpop.permute.xlu0 %640
        %v642 = vsel %vm450, %v639, %v641
        %v643 = vsel %vm450, %v641, %v639
        %v644 = vmul.f32 %v642, %v456
        %v645 = vmul.f32 %v643, %v460
        %646 = vrot.lane.b32.xlu0 %v604, 113
        %v647 = vpop.permute.xlu0 %646
        %648 = vrot.lane.b32.xlu0 %v605, 113
        %v649 = vpop.permute.xlu0 %648
        %v650 = vsel %vm467, %v647, %v649
        %v651 = vsel %vm467, %v649, %v647
        %v652 = vmul.f32 %v650, %v473
        %v653 = vmul.f32 %v651, %v477
        %654 = vrot.lane.b32.xlu0 %v604, 112
        %v655 = vpop.permute.xlu0 %654
        %656 = vrot.lane.b32.xlu0 %v605, 112
        %v657 = vpop.permute.xlu0 %656
        %v658 = vsel %vm484, %v655, %v657
        %v659 = vsel %vm484, %v657, %v655
        %v660 = vmul.f32 %v658, %v490
        %v661 = vmul.f32 %v659, %v494
        %662 = vrot.lane.b32.xlu0 %v604, 111
        %v663 = vpop.permute.xlu0 %662
        %664 = vrot.lane.b32.xlu0 %v605, 111
        %v665 = vpop.permute.xlu0 %664
        %v666 = vsel %vm501, %v663, %v665
        %v667 = vsel %vm501, %v665, %v663
        %v668 = vmul.f32 %v666, %v507
        %v669 = vmul.f32 %v667, %v511
        %v670 = vld [vmem:[%s5] sm:$0xf]
        %v671 = vpack.c.bf16 %v620, %v612
        %v672 = vpack.c.bf16 %v621, %v613
        %v673 = vpack.c.bf16 %v636, %v628
        %v674 = vpack.c.bf16 %v637, %v629
        %v675 = vpack.c.bf16 %v644, %v604
        %v676 = vpack.c.bf16 %v645, %v605
        %v677 = vpack.c.bf16 %v660, %v652
        %v678 = vpack.c.bf16 %v661, %v653
        %v679 = vpack.c.bf16 %v668, %v668
        %v680 = vpack.c.bf16 %v669, %v669
        %v682 = vsel %vm531, %v670, 0
        %v685 = vsel %vm322, %v679, 0
        %v688 = vsel %vm322, %v680, 0
        %690 = vmatprep.subr.bf16.mxu0 %v672
        %691 = vmatpush1.bf16.msra.mxu0 %v671
        %692 = vmatprep.subr.bf16.mxu0 %v674
        %693 = vmatpush1.bf16.msra.mxu0 %v673
        %694 = vmatprep.subr.bf16.mxu0 %v676
        %695 = vmatpush1.bf16.msra.mxu0 %v675
        %696 = vmatprep.subr.bf16.mxu0 %v678
        %697 = vmatpush1.bf16.msra.mxu0 %v677
        %698 = vmatprep.subr.bf16.mxu0 %v688
        %699 = vmatpush1.bf16.msra.mxu0 %v685
        %700 = vmatprep.subr.bf16.mxu0 0
        %701 = vmatpush1.bf16.msra.mxu0 0
        %702 = vmatprep.subr.bf16.mxu0 0
        %703 = vmatpush1.bf16.msra.mxu0 0
        %704 = vmatprep.subr.bf16.mxu0 0
        %705 = vmatpush1.bf16.msra.mxu0 0
        %706 = vmatprep.subr.bf16.mxu0 0
        %707 = vmatpush1.bf16.msra.mxu0 0
        %708 = vmatprep.subr.bf16.mxu0 0
        %709 = vmatpush1.bf16.msra.mxu0 0
        %710 = vmatprep.subr.bf16.mxu0 0
        %711 = vmatpush1.bf16.msra.mxu0 0
        %712 = vmatprep.subr.bf16.mxu0 0
        %713 = vmatpush1.bf16.msra.mxu0 0
        %714 = vmatprep.subr.bf16.mxu0 0
        %715 = vmatpush1.bf16.msra.mxu0 0
        %716 = vmatprep.subr.bf16.mxu0 0
        %717 = vmatpush1.bf16.msra.mxu0 0
        %718 = vmatprep.subr.bf16.mxu0 0
        %719 = vmatpush1.bf16.msra.mxu0 0
        %720 = vmatprep.subr.bf16.mxu0 0
        %721 = vmatpush1.bf16.msra.mxu0 0
        %722 = vmatprep.mubr.bf16.mxu0 0
        %723 = vmatmul.mubr.bf16.gmra.mrb[0].mxu0 %v682
        %v724 = vpop.f32.mrb[0].mxu0
        %v725 = vadd.f32 0.0, %v724
        %v726 = vpop.f32.mrb[0].mxu0
        %v727 = vadd.f32 0.0, %v726
        %v728 = vpop.f32.mrb[0].mxu0
        %v729 = vpop.f32.mrb[0].mxu0
        %730 = vdwg.mxu0
        %vm731 = vcmp.ge.f32.partialorder %v725, 0.0
        %vm732 = vcmp.ge.f32.partialorder %v727, 0.0
        %v733 = vmul.f32 %v725, 0.2
        %v734 = vmul.f32 %v727, 0.2
        %v735 = vsel %vm731, %v725, %v733
        %v736 = vsel %vm732, %v727, %v734
        %v737 = vld [vmem:[%s6] sm:$0xf]
        %v738 = vpack.c.bf16 %v735, %v735
        %v739 = vpack.c.bf16 %v736, %v736
        %v741 = vsel %vm318, %v737, 0
        %v744 = vsel %vm322, %v738, 0
        %v747 = vsel %vm322, %v739, 0
        %749 = vmatprep.subr.bf16.mxu0 %v747
        %750 = vmatpush1.bf16.msra.mxu0 %v744
        %751 = vmatprep.subr.bf16.mxu0 0
        %752 = vmatpush1.bf16.msra.mxu0 0
        %753 = vmatprep.subr.bf16.mxu0 0
        %754 = vmatpush1.bf16.msra.mxu0 0
        %755 = vmatprep.subr.bf16.mxu0 0
        %756 = vmatpush1.bf16.msra.mxu0 0
        %757 = vmatprep.subr.bf16.mxu0 0
        %758 = vmatpush1.bf16.msra.mxu0 0
        %759 = vmatprep.subr.bf16.mxu0 0
        %760 = vmatpush1.bf16.msra.mxu0 0
        %761 = vmatprep.subr.bf16.mxu0 0
        %762 = vmatpush1.bf16.msra.mxu0 0
        %763 = vmatprep.subr.bf16.mxu0 0
        %764 = vmatpush1.bf16.msra.mxu0 0
        %765 = vmatprep.subr.bf16.mxu0 0
        %766 = vmatpush1.bf16.msra.mxu0 0
        %767 = vmatprep.subr.bf16.mxu0 0
        %768 = vmatpush1.bf16.msra.mxu0 0
        %769 = vmatprep.subr.bf16.mxu0 0
        %770 = vmatpush1.bf16.msra.mxu0 0
        %771 = vmatprep.subr.bf16.mxu0 0
        %772 = vmatpush1.bf16.msra.mxu0 0
        %773 = vmatprep.subr.bf16.mxu0 0
        %774 = vmatpush1.bf16.msra.mxu0 0
        %775 = vmatprep.subr.bf16.mxu0 0
        %776 = vmatpush1.bf16.msra.mxu0 0
        %777 = vmatprep.subr.bf16.mxu0 0
        %778 = vmatpush1.bf16.msra.mxu0 0
        %779 = vmatprep.subr.bf16.mxu0 0
        %780 = vmatpush1.bf16.msra.mxu0 0
        %781 = vmatprep.mubr.bf16.mxu0 0
        %782 = vmatmul.mubr.bf16.gmra.mrb[0].mxu0 %v741
        %v783 = vpop.f32.mrb[0].mxu0
        %v784 = vadd.f32 %v311, %v783
        %v785 = vpop.f32.mrb[0].mxu0
        %v786 = vadd.f32 %v312, %v785
        %v787 = vpop.f32.mrb[0].mxu0
        %v788 = vpop.f32.mrb[0].mxu0
        %789 = vdwg.mxu0
        %790 = vst [vmem:[%s307] sm:$0xff] %v784
        %791 = vst [vmem:[%s307 + $0x8] sm:$0xff] %v786
        %s792 = sand.u32 %s185, 1
        %s793 = scalar_lea.sflag [#allocation4], %s792
        %s794 = sand.u32 %s185, 1
        %s795 = smul.addr %s794, 16
        %s796 = scalar_lea.vmem [#allocation7], %s795
        // Predicated region
        $region57: #{tpu_custom_call.1} parent=47 // pred_check
          %p797 = pneg %p195
        $region58: #{tpu_custom_call.1} parent=47 // pred_check_branch
          %799 = sbr.rel (%p797) target = $region60
        $region59: #{tpu_custom_call.1} parent=47 // pred_region
          %s800 = smul.u32 2, %s25
          %s802 = ssub.s32 256, 256
          %803 = vsyncadd %s793, %s802
          %s804 = smul.addr %s800, 128
          %s805 = scalar_lea.hbm %s7, %s804
          %s807 = sshll.u32 %s796, 4
          %s808 = int_to_ptr.vmem [resolvable:$true] %s807
          %810 = dma.vmem_to_hbm [thread:$0]  %s808, 256, %s805, %s793
        $region60: #{tpu_custom_call.1} parent=47 // pred_fallthru
          _
      $region48: #{tpu_custom_call.1} parent=5 // pred_fallthru
        _
      %p811 = scmp.le.s32.totalorder 2, %s20
      // Predicated region
      $region61: #{tpu_custom_call.1} parent=5 // pred_check
        %p812 = pneg %p811
      $region62: #{tpu_custom_call.1} parent=5 // pred_check_branch
        %814 = sbr.rel (%p812) target = $region64
      $region63: #{tpu_custom_call.1} parent=5 // pred_region
        %s815 = ssub.s32 %s20, 2
        // Predicated region
        $region65: #{tpu_custom_call.1} parent=63 // pred_check
          %p816 = pneg %p201
        $region66: #{tpu_custom_call.1} parent=63 // pred_check_branch
          %818 = sbr.rel (%p816) target = $region68
        $region67: #{tpu_custom_call.1} parent=63 // pred_region
          %s819 = sand.u32 %s186, 1
          %s820 = scalar_lea.sflag [#allocation4], %s819
          %s821 = sand.u32 %s186, 1
          %s822 = smul.addr %s821, 16
          %s823 = scalar_lea.vmem [#allocation7], %s822
          %824 = dma.done %s820, 256
        $region68: #{tpu_custom_call.1} parent=63 // pred_fallthru
          _
      $region64: #{tpu_custom_call.1} parent=5 // pred_fallthru
        _
    $region6: #{tpu_custom_call.1} parent=1 // loop_footer
      %s24 = sadd.s32 1, %s20
    $region7: #{tpu_custom_call.1} parent=1 // loop_footer_branch
      %19 = sbr.rel target = $region3
    $region8: #{tpu_custom_call.1} parent=1 // loop_exit
      _
    %825 = vsyncpa [#allocation3], 1
    %s826 = scalar_lea.sflag [#allocation3], 1
    %827 = vsyncpa %s826, 1
    %828 = vsyncpa [#allocation6], 1
    %829 = vsyncpa [#allocation4], 1
    %s830 = scalar_lea.sflag [#allocation4], 1
    %831 = vsyncpa %s830, 1

</llo_original>
